<compile_context>
chip_gen: v6e
topology: v6e:2x2x1
jax: 0.10.0
libtpu: 0.0.40
codegen_flags: <defaults>
</compile_context>

<pallas_src>
import jax
import jax.numpy as jnp
from jax.experimental import pallas as pl
from jax.experimental.pallas import tpu as pltpu

NEG_BIG = -1e30  # bias for padded softmax columns -> exp(logit - max) == 0.0


def fasd_forward_kernel(x_ref, w1_ref, b1_ref, w2_ref, b2_ref,
                        we_ref, be_ref, wp_ref, bp_ref, out_ref):
    # ---- encoder hidden layer 1: Linear + relu (dropout is identity at eval) ----
    # bf16 MXU operands, f32 accumulate; elementwise chain stays f32.
    h = jnp.dot(x_ref[...], w1_ref[...],
                preferred_element_type=jnp.float32) + b1_ref[...]
    h = jnp.maximum(h, 0.0)

    # ---- encoder hidden layer 2: Linear + relu ----
    h = jnp.dot(h.astype(jnp.bfloat16), w2_ref[...],
                preferred_element_type=jnp.float32) + b2_ref[...]
    h = jnp.maximum(h, 0.0)

    # ---- encoder output Linear + MultiActivationHead (relu per embedding col) ----
    e = jnp.dot(h.astype(jnp.bfloat16), we_ref[...],
                preferred_element_type=jnp.float32) + be_ref[...]
    e = jnp.maximum(e, 0.0)

    # ---- torch.clamp(Xt, -1, 1) ----
    e = jnp.clip(e, -1.0, 1.0)

    # ---- predictor: Linear + softmax over the lane-dense (padded-to-128) classes ----
    logits = jnp.dot(e.astype(jnp.bfloat16), wp_ref[...],
                     preferred_element_type=jnp.float32) + bp_ref[...]
    m = jnp.max(logits, axis=-1, keepdims=True)
    p = jnp.exp(logits - m)                       # padded cols -> exp(-1e30 - m) == 0
    s = jnp.sum(p, axis=-1, keepdims=True)
    out_ref[...] = p * pl.reciprocal(s, approx=True)   # divide moved to EUP slot


def fasd_forward(x, params, *, batch_tile=128):
    B, n_in = x.shape
    n_emb, n_out = params["wp"].shape
    n_hid = params["w1"].shape[1]

    # Lane-dense output: pad class dim to a multiple of 128.
    n_out_pad = max(128, -(-n_out // 128) * 128)
    # Pad batch to a multiple of batch_tile (caller should keep >= 2 grid steps
    # so v7x's two TensorCores are both used).
    B_pad = -(-B // batch_tile) * batch_tile

    # ---- parameter prep: bf16 matmul operands (cast once), f32 biases,
    # predictor weights/bias padded so the output tile is lane-dense. ----
    w1 = params["w1"].astype(jnp.bfloat16)
    w2 = params["w2"].astype(jnp.bfloat16)
    we = params["we"].astype(jnp.bfloat16)
    wp = jnp.zeros((n_emb, n_out_pad), jnp.bfloat16).at[:, :n_out].set(
        params["wp"].astype(jnp.bfloat16))
    b1 = params["b1"].astype(jnp.float32)
    b2 = params["b2"].astype(jnp.float32)
    be = params["be"].astype(jnp.float32)
    bp = jnp.full((1, n_out_pad), NEG_BIG, jnp.float32).at[:, :n_out].set(
        params["bp"].astype(jnp.float32))

    xp = x.astype(jnp.bfloat16)
    if B_pad != B:
        xp = jnp.zeros((B_pad, n_in), jnp.bfloat16).at[:B, :].set(xp)

    # Grid-invariant full-array weight blocks.
    # NOTE(v7x): at production hidden sizes, add pipeline_mode=pl.Buffered(1) to
    # these specs to halve their resident VMEM footprint (block index never changes).
    full = lambda a: pl.BlockSpec(a.shape, lambda i: (0,) * a.ndim)

    flops = 2 * B_pad * (n_in * n_hid + n_hid * n_hid
                         + n_hid * n_emb + n_emb * n_out_pad)
    bytes_accessed = (xp.size * 2
                      + (w1.size + w2.size + we.size + wp.size) * 2
                      + (b1.size + b2.size + be.size + bp.size) * 4
                      + B_pad * n_out_pad * 4)
    cost = pl.CostEstimate(flops=flops,
                           transcendentals=B_pad * n_out_pad,
                           bytes_accessed=bytes_accessed)

    grid_spec = pltpu.PrefetchScalarGridSpec(
        num_scalar_prefetch=0,
        grid=(B_pad // batch_tile,),
        in_specs=[
            pl.BlockSpec((batch_tile, n_in), lambda i: (i, 0)),   # x, tiled over batch
            full(w1), full(b1),
            full(w2), full(b2),
            full(we), full(be),
            full(wp), full(bp),
        ],
        out_specs=pl.BlockSpec((batch_tile, n_out_pad), lambda i: (i, 0)),
    )

    out = pl.pallas_call(
        fasd_forward_kernel,
        out_shape=jax.ShapeDtypeStruct((B_pad, n_out_pad), jnp.float32),
        grid_spec=grid_spec,
        compiler_params=pltpu.CompilerParams(
            dimension_semantics=("parallel",),
            vmem_limit_bytes=48 * 1024 * 1024),   # headroom under v7x's 64 MiB
        cost_estimate=cost,
    )(xp, w1, b1, w2, b2, we, be, wp, bp)

    return out[:B, :n_out]


def init_params(key, n_units_in, n_units_hidden, n_units_embedding, n_units_out):
    """Deterministic init mimicking PyTorch nn.Linear (uniform +/- 1/sqrt(fan_in))."""
    def linear(k, fan_in, fan_out):
        kw, kb = jax.random.split(k)
        bound = 1.0 / jnp.sqrt(fan_in)
        w = jax.random.uniform(kw, (fan_in, fan_out), jnp.float32, -bound, bound)
        b = jax.random.uniform(kb, (1, fan_out), jnp.float32, -bound, bound)
        return w, b

    k1, k2, k3, k4 = jax.random.split(key, 4)
    w1, b1 = linear(k1, n_units_in, n_units_hidden)         # encoder hidden 1
    w2, b2 = linear(k2, n_units_hidden, n_units_hidden)     # encoder hidden 2
    we, be = linear(k3, n_units_hidden, n_units_embedding)  # encoder output
    wp, bp = linear(k4, n_units_embedding, n_units_out)     # predictor
    return dict(w1=w1, b1=b1, w2=w2, b2=b2, we=we, be=be, wp=wp, bp=bp)


def fasd_reference(x, p, *, matmul_dtype=jnp.float32):
    """Plain-JAX reference. matmul_dtype=bf16 mirrors the kernel's MXU numerics."""
    c = lambda a: a.astype(matmul_dtype)
    dot = lambda a, b: jnp.dot(c(a), c(b), preferred_element_type=jnp.float32)
    h = jnp.maximum(dot(x, p["w1"]) + p["b1"], 0.0)
    h = jnp.maximum(dot(h, p["w2"]) + p["b2"], 0.0)
    e = jnp.maximum(dot(h, p["we"]) + p["be"], 0.0)
    e = jnp.clip(e, -1.0, 1.0)
    return jax.nn.softmax(dot(e, p["wp"]) + p["bp"], axis=-1)


if __name__ == "__main__":
    # Shapes consistent with the module's __init__ / defaults:
    #   n_units_in=32, n_units_hidden=64, n_layers_hidden=2, n_units_embedding=16,
    #   target_nonlin_out=[('softmax', 4)]; batch ~ module batch_size (200 -> 256).
    B, N_IN, N_HID, N_EMB, N_OUT = 256, 32, 64, 16, 4

    key = jax.random.PRNGKey(0)
    kx, kp = jax.random.split(key)
    x = jax.random.normal(kx, (B, N_IN), jnp.float32)
    params = init_params(kp, N_IN, N_HID, N_EMB, N_OUT)

    out = fasd_forward(x, params, batch_tile=128)   # grid of 2 -> both v7x TCs busy
    out = jax.block_until_ready(out)
    assert out.shape == (B, N_OUT)

    # Numerics-matched reference (same bf16-operand / f32-accumulate pattern);
    # only the approx reciprocal differs -> tight tolerance.
    ref_bf16 = fasd_reference(x, params, matmul_dtype=jnp.bfloat16)
    assert jnp.allclose(out, ref_bf16, atol=2e-3, rtol=2e-3), "mismatch vs bf16 ref"

    # Full-f32 reference (PyTorch-equivalent numerics); loose tolerance covers the
    # bf16 MXU operand rounding.
    ref_f32 = fasd_reference(x, params, matmul_dtype=jnp.float32)
    assert jnp.allclose(out, ref_f32, atol=3e-2, rtol=0.0), "mismatch vs f32 ref"

    print("KERNEL_OK")
</pallas_src>

<mosaic_0001>
module attributes {stable_mosaic.version = 11 : i64} {
  func.func @fasd_forward_kernel(%arg0: i32, %arg1: memref<128x32xbf16, #tpu.memory_space<vmem>>, %arg2: memref<32x64xbf16, #tpu.memory_space<vmem>>, %arg3: memref<1x64xf32, #tpu.memory_space<vmem>>, %arg4: memref<64x64xbf16, #tpu.memory_space<vmem>>, %arg5: memref<1x64xf32, #tpu.memory_space<vmem>>, %arg6: memref<64x16xbf16, #tpu.memory_space<vmem>>, %arg7: memref<1x16xf32, #tpu.memory_space<vmem>>, %arg8: memref<16x128xbf16, #tpu.memory_space<vmem>>, %arg9: memref<1x128xf32, #tpu.memory_space<vmem>>, %arg10: memref<128x128xf32, #tpu.memory_space<vmem>>) attributes {dimension_semantics = [#tpu.dimension_semantics<parallel>], iteration_bounds = array<i64: 2>, scalar_prefetch = 0 : i64, scratch_operands = 0 : i64, tpu.core_type = #tpu.core_type<tc>, window_params = [{transform_indices = @transform_0, window_bounds = array<i64: 128, 32>}, {pipeline_mode = #tpu.pipeline_mode<synchronous>, transform_indices = @transform_1, window_bounds = array<i64: 32, 64>}, {pipeline_mode = #tpu.pipeline_mode<synchronous>, transform_indices = @transform_2, window_bounds = array<i64: 1, 64>}, {pipeline_mode = #tpu.pipeline_mode<synchronous>, transform_indices = @transform_3, window_bounds = array<i64: 64, 64>}, {pipeline_mode = #tpu.pipeline_mode<synchronous>, transform_indices = @transform_4, window_bounds = array<i64: 1, 64>}, {pipeline_mode = #tpu.pipeline_mode<synchronous>, transform_indices = @transform_5, window_bounds = array<i64: 64, 16>}, {pipeline_mode = #tpu.pipeline_mode<synchronous>, transform_indices = @transform_6, window_bounds = array<i64: 1, 16>}, {pipeline_mode = #tpu.pipeline_mode<synchronous>, transform_indices = @transform_7, window_bounds = array<i64: 16, 128>}, {pipeline_mode = #tpu.pipeline_mode<synchronous>, transform_indices = @transform_8, window_bounds = array<i64: 1, 128>}, {transform_indices = @transform_9, window_bounds = array<i64: 128, 128>}]} {
    %c0 = arith.constant 0 : index
    %c0_0 = arith.constant 0 : index
    %0 = vector.load %arg1[%c0, %c0_0] : memref<128x32xbf16, #tpu.memory_space<vmem>>, vector<128x32xbf16>
    %c0_1 = arith.constant 0 : index
    %c0_2 = arith.constant 0 : index
    %1 = vector.load %arg2[%c0_1, %c0_2] : memref<32x64xbf16, #tpu.memory_space<vmem>>, vector<32x64xbf16>
    %cst = arith.constant dense<0.000000e+00> : vector<128x64xf32>
    %2 = tpu.matmul %0, %1, %cst {dimension_numbers = #tpu.dot_dimension_numbers<[1], [0], [0], [1], [0, 0, 1, 1], [], []>} : vector<128x32xbf16>, vector<32x64xbf16>, vector<128x64xf32> -> vector<128x64xf32>
    %c0_3 = arith.constant 0 : index
    %c0_4 = arith.constant 0 : index
    %3 = vector.load %arg3[%c0_3, %c0_4] : memref<1x64xf32, #tpu.memory_space<vmem>>, vector<1x64xf32>
    %4 = vector.broadcast %3 : vector<1x64xf32> to vector<128x64xf32>
    %5 = arith.addf %2, %4 : vector<128x64xf32>
    %cst_5 = arith.constant 0.000000e+00 : f32
    %6 = vector.broadcast %cst_5 : f32 to vector<128x64xf32>
    %7 = arith.maximumf %5, %6 : vector<128x64xf32>
    %8 = arith.truncf %7 : vector<128x64xf32> to vector<128x64xbf16>
    %c0_6 = arith.constant 0 : index
    %c0_7 = arith.constant 0 : index
    %9 = vector.load %arg4[%c0_6, %c0_7] : memref<64x64xbf16, #tpu.memory_space<vmem>>, vector<64x64xbf16>
    %cst_8 = arith.constant dense<0.000000e+00> : vector<128x64xf32>
    %10 = tpu.matmul %8, %9, %cst_8 {dimension_numbers = #tpu.dot_dimension_numbers<[1], [0], [0], [1], [0, 0, 1, 1], [], []>} : vector<128x64xbf16>, vector<64x64xbf16>, vector<128x64xf32> -> vector<128x64xf32>
    %c0_9 = arith.constant 0 : index
    %c0_10 = arith.constant 0 : index
    %11 = vector.load %arg5[%c0_9, %c0_10] : memref<1x64xf32, #tpu.memory_space<vmem>>, vector<1x64xf32>
    %12 = vector.broadcast %11 : vector<1x64xf32> to vector<128x64xf32>
    %13 = arith.addf %10, %12 : vector<128x64xf32>
    %cst_11 = arith.constant 0.000000e+00 : f32
    %14 = vector.broadcast %cst_11 : f32 to vector<128x64xf32>
    %15 = arith.maximumf %13, %14 : vector<128x64xf32>
    %16 = arith.truncf %15 : vector<128x64xf32> to vector<128x64xbf16>
    %c0_12 = arith.constant 0 : index
    %c0_13 = arith.constant 0 : index
    %17 = vector.load %arg6[%c0_12, %c0_13] : memref<64x16xbf16, #tpu.memory_space<vmem>>, vector<64x16xbf16>
    %cst_14 = arith.constant dense<0.000000e+00> : vector<128x16xf32>
    %18 = tpu.matmul %16, %17, %cst_14 {dimension_numbers = #tpu.dot_dimension_numbers<[1], [0], [0], [1], [0, 0, 1, 1], [], []>} : vector<128x64xbf16>, vector<64x16xbf16>, vector<128x16xf32> -> vector<128x16xf32>
    %c0_15 = arith.constant 0 : index
    %c0_16 = arith.constant 0 : index
    %19 = vector.load %arg7[%c0_15, %c0_16] : memref<1x16xf32, #tpu.memory_space<vmem>>, vector<1x16xf32>
    %20 = vector.broadcast %19 : vector<1x16xf32> to vector<128x16xf32>
    %21 = arith.addf %18, %20 : vector<128x16xf32>
    %cst_17 = arith.constant 0.000000e+00 : f32
    %22 = vector.broadcast %cst_17 : f32 to vector<128x16xf32>
    %23 = arith.maximumf %21, %22 : vector<128x16xf32>
    %cst_18 = arith.constant -1.000000e+00 : f32
    %cst_19 = arith.constant 1.000000e+00 : f32
    %24 = vector.broadcast %cst_18 : f32 to vector<128x16xf32>
    %25 = arith.maximumf %24, %23 : vector<128x16xf32>
    %26 = vector.broadcast %cst_19 : f32 to vector<128x16xf32>
    %27 = arith.minimumf %26, %25 : vector<128x16xf32>
    %28 = arith.truncf %27 : vector<128x16xf32> to vector<128x16xbf16>
    %c0_20 = arith.constant 0 : index
    %c0_21 = arith.constant 0 : index
    %29 = vector.load %arg8[%c0_20, %c0_21] : memref<16x128xbf16, #tpu.memory_space<vmem>>, vector<16x128xbf16>
    %cst_22 = arith.constant dense<0.000000e+00> : vector<128x128xf32>
    %30 = tpu.matmul %28, %29, %cst_22 {dimension_numbers = #tpu.dot_dimension_numbers<[1], [0], [0], [1], [0, 0, 1, 1], [], []>} : vector<128x16xbf16>, vector<16x128xbf16>, vector<128x128xf32> -> vector<128x128xf32>
    %c0_23 = arith.constant 0 : index
    %c0_24 = arith.constant 0 : index
    %31 = vector.load %arg9[%c0_23, %c0_24] : memref<1x128xf32, #tpu.memory_space<vmem>>, vector<1x128xf32>
    %32 = vector.broadcast %31 : vector<1x128xf32> to vector<128x128xf32>
    %33 = arith.addf %30, %32 : vector<128x128xf32>
    %cst_25 = arith.constant dense<0xFF800000> : vector<128xf32>
    %34 = vector.multi_reduction <maximumf>, %33, %cst_25 [1] : vector<128x128xf32> to vector<128xf32>
    %35 = vector.shape_cast %34 : vector<128xf32> to vector<128x1xf32>
    %36 = vector.broadcast %35 : vector<128x1xf32> to vector<128x128xf32>
    %37 = arith.subf %33, %36 : vector<128x128xf32>
    %38 = math.exp %37 : vector<128x128xf32>
    %cst_26 = arith.constant dense<0.000000e+00> : vector<128xf32>
    %39 = vector.multi_reduction <add>, %38, %cst_26 [1] : vector<128x128xf32> to vector<128xf32>
    %40 = vector.shape_cast %39 : vector<128xf32> to vector<128x1xf32>
    %41 = tpu.reciprocal %40 {approx = true} : vector<128x1xf32> -> vector<128x1xf32>
    %42 = vector.broadcast %41 : vector<128x1xf32> to vector<128x128xf32>
    %43 = arith.mulf %38, %42 : vector<128x128xf32>
    %c0_27 = arith.constant 0 : index
    %c0_28 = arith.constant 0 : index
    %44 = vector.load %arg10[%c0_27, %c0_28] : memref<128x128xf32, #tpu.memory_space<vmem>>, vector<128x128xf32>
    tpu.vector_store %arg10[%c0_27, %c0_28], %43 {strides = array<i32>} : memref<128x128xf32, #tpu.memory_space<vmem>>, vector<128x128xf32>,
    return
  }
  func.func @transform_0(%arg0: i32) -> (i32, i32) {
    %c0_i32 = arith.constant 0 : i32
    %c0_i32_0 = arith.constant 0 : i32
    return %arg0, %c0_i32 : i32, i32
  }
  func.func @transform_1(%arg0: i32) -> (i32, i32) {
    %c0_i32 = arith.constant 0 : i32
    %c0_i32_0 = arith.constant 0 : i32
    %c0_i32_1 = arith.constant 0 : i32
    return %c0_i32, %c0_i32_0 : i32, i32
  }
  func.func @transform_2(%arg0: i32) -> (i32, i32) {
    %c0_i32 = arith.constant 0 : i32
    %c0_i32_0 = arith.constant 0 : i32
    %c0_i32_1 = arith.constant 0 : i32
    return %c0_i32, %c0_i32_0 : i32, i32
  }
  func.func @transform_3(%arg0: i32) -> (i32, i32) {
    %c0_i32 = arith.constant 0 : i32
    %c0_i32_0 = arith.constant 0 : i32
    %c0_i32_1 = arith.constant 0 : i32
    return %c0_i32, %c0_i32_0 : i32, i32
  }
  func.func @transform_4(%arg0: i32) -> (i32, i32) {
    %c0_i32 = arith.constant 0 : i32
    %c0_i32_0 = arith.constant 0 : i32
    %c0_i32_1 = arith.constant 0 : i32
    return %c0_i32, %c0_i32_0 : i32, i32
  }
  func.func @transform_5(%arg0: i32) -> (i32, i32) {
    %c0_i32 = arith.constant 0 : i32
    %c0_i32_0 = arith.constant 0 : i32
    %c0_i32_1 = arith.constant 0 : i32
    return %c0_i32, %c0_i32_0 : i32, i32
  }
  func.func @transform_6(%arg0: i32) -> (i32, i32) {
    %c0_i32 = arith.constant 0 : i32
    %c0_i32_0 = arith.constant 0 : i32
    %c0_i32_1 = arith.constant 0 : i32
    return %c0_i32, %c0_i32_0 : i32, i32
  }
  func.func @transform_7(%arg0: i32) -> (i32, i32) {
    %c0_i32 = arith.constant 0 : i32
    %c0_i32_0 = arith.constant 0 : i32
    %c0_i32_1 = arith.constant 0 : i32
    return %c0_i32, %c0_i32_0 : i32, i32
  }
  func.func @transform_8(%arg0: i32) -> (i32, i32) {
    %c0_i32 = arith.constant 0 : i32
    %c0_i32_0 = arith.constant 0 : i32
    %c0_i32_1 = arith.constant 0 : i32
    return %c0_i32, %c0_i32_0 : i32, i32
  }
  func.func @transform_9(%arg0: i32) -> (i32, i32) {
    %c0_i32 = arith.constant 0 : i32
    %c0_i32_0 = arith.constant 0 : i32
    return %arg0, %c0_i32 : i32, i32
  }
}

</mosaic_0001>

<llo_original>
// kernel: tpu_custom_call.1
$region0: #{tpu_custom_call.1}
  #allocation0 [shape = 'u32[]', space=smem, size = 0x4, offset = 0x4, fixed_abs, tag = 'smem constant byte address 0x4 - core index']
  #allocation1 [shape = 'u32[144,128]{1,0:T(1,128)}', space=vmem, size = 0x12000, scoped, tag = 'internal scratch']
  %s0 = inlined_call_operand.vmem [shape: bf16[256,32], index: 0, kind: input, shape index: {}]
  %s1 = inlined_call_operand.vmem [shape: bf16[32,64], index: 1, kind: input, shape index: {}]
  %s2 = inlined_call_operand.vmem [shape: f32[1,64], index: 2, kind: input, shape index: {}]
  %s3 = inlined_call_operand.vmem [shape: bf16[64,64], index: 3, kind: input, shape index: {}]
  %s4 = inlined_call_operand.vmem [shape: f32[1,64], index: 4, kind: input, shape index: {}]
  %s5 = inlined_call_operand.vmem [shape: bf16[64,16], index: 5, kind: input, shape index: {}]
  %s6 = inlined_call_operand.vmem [shape: f32[1,16], index: 6, kind: input, shape index: {}]
  %s7 = inlined_call_operand.vmem [shape: bf16[16,128], index: 7, kind: input, shape index: {}]
  %s8 = inlined_call_operand.vmem [shape: f32[1,128], index: 8, kind: input, shape index: {}]
  %s9 = inlined_call_operand.hbm [shape: f32[256,128], index: 9, kind: output, shape index: {}]
  %s10 = sld [smem:[#allocation0]]
  $region69: #{tpu_custom_call.1} parent=0
    _
  %s12 = ssub.s32 1, %s10
  %s13 = scalar_select 0, %s12, %s10
  $region1: #{tpu_custom_call.1} parent=0
    #allocation2 [shape = 'u8[131072]{0}', space=vmem, size = 0x20000, scoped, tag = 'output window, operand 0']
    #allocation3 [shape = 's32[2]{0}', space=sflag, size = 0x8, scoped, tag = 'scoped memory for tpu_custom_call.1']
    %14 = vsyncpa [#allocation3], 0
    %s15 = scalar_lea.sflag [#allocation3], 1
    %16 = vsyncpa %s15, 0
    loop: start=0, step=1, limit=4
    $region2: #{tpu_custom_call.1} parent=1 // loop_pre_header
      _
    $region3: #{tpu_custom_call.1} parent=1 // loop_header
      %s18 = sphi 0, %s22
      %p19 = scmp.ge.s32.totalorder %s18, 4
      %s28 = sphi 0, %s30
      %s31 = sphi 0, %s28
      %s32 = sphi 0, %s31
      %s48 = sphi 0, %s32
      %s52 = sphi 0, %s52
      %s54 = sphi 0, %s52
      %s55 = sphi 0, %s54
      %s69 = sphi 0, %s55
      %s73 = sphi 0, %s73
      %s75 = sphi 0, %s73
      %s76 = sphi 0, %s75
      %s90 = sphi 0, %s76
      %s94 = sphi 0, %s94
      %s96 = sphi 0, %s94
      %s97 = sphi 0, %s96
      %s111 = sphi 0, %s97
      %s115 = sphi 0, %s115
      %s117 = sphi 0, %s115
      %s118 = sphi 0, %s117
      %s132 = sphi 0, %s118
      %s136 = sphi 0, %s136
      %s138 = sphi 0, %s136
      %s139 = sphi 0, %s138
      %s153 = sphi 0, %s139
      %s157 = sphi 0, %s157
      %s159 = sphi 0, %s157
      %s160 = sphi 0, %s159
      %s174 = sphi 0, %s160
      %s178 = sphi 0, %s178
      %s180 = sphi 0, %s178
      %s181 = sphi 0, %s180
      %s195 = sphi 0, %s181
      %s199 = sphi 0, %s199
      %s201 = sphi 0, %s199
      %s202 = sphi 0, %s201
      %s216 = sphi 0, %s202
      %s222 = sphi 0, %s224
      %s225 = sphi 0, %s222
      %s226 = sphi 0, %s225
      %s242 = sphi 0, %s226
    $region4: #{tpu_custom_call.1} parent=1 // loop_header_branch
      %21 = sbr.rel (%p19) target = $region8
    $region5: #{tpu_custom_call.1} parent=1 // loop_body
      %s23 = ssub.s32 %s18, 1
      %s24 = ssub.s32 %s18, 2
      %s25 = sadd.s32 %s18, 1
      %s26 = ssub.s32 %s18, %s25
      %p27 = scmp.eq.s32.totalorder %s26, 0
      %s29 = sadd.s32 %s28, 1
      %s30 = scalar_select %p27, %s28, %s29
      %p33 = pneg %p27
      %p34 = scmp.eq.s32.totalorder %s18, 1
      %p35 = por %p33, %p34
      %p36 = scmp.ne.s32.totalorder %s28, %s31
      %p37 = scmp.eq.s32.totalorder %s18, 0
      %p38 = por %p36, %p37
      %p39 = scmp.ne.s32.totalorder %s28, %s31
      %p40 = scmp.eq.s32.totalorder %s23, 1
      %p41 = por %p39, %p40
      %p42 = scmp.ne.s32.totalorder %s31, %s32
      %p43 = scmp.eq.s32.totalorder %s23, 0
      %p44 = por %p42, %p43
      %p45 = scmp.ne.s32.totalorder %s31, %s32
      %p46 = scmp.eq.s32.totalorder %s24, 1
      %p47 = por %p45, %p46
      %p49 = scmp.ne.s32.totalorder %s32, %s48
      %p50 = scmp.eq.s32.totalorder %s24, 0
      %p51 = por %p49, %p50
      %s53 = sadd.s32 %s52, 1
      %p56 = scmp.eq.s32.totalorder %s18, 1
      %p57 = scmp.ne.s32.totalorder %s52, %s54
      %p58 = scmp.eq.s32.totalorder %s18, 0
      %p59 = por %p57, %p58
      %p60 = scmp.ne.s32.totalorder %s52, %s54
      %p61 = scmp.eq.s32.totalorder %s23, 1
      %p62 = por %p60, %p61
      %p63 = scmp.ne.s32.totalorder %s54, %s55
      %p64 = scmp.eq.s32.totalorder %s23, 0
      %p65 = por %p63, %p64
      %p66 = scmp.ne.s32.totalorder %s54, %s55
      %p67 = scmp.eq.s32.totalorder %s24, 1
      %p68 = por %p66, %p67
      %p70 = scmp.ne.s32.totalorder %s55, %s69
      %p71 = scmp.eq.s32.totalorder %s24, 0
      %p72 = por %p70, %p71
      %s74 = sadd.s32 %s73, 1
      %p77 = scmp.eq.s32.totalorder %s18, 1
      %p78 = scmp.ne.s32.totalorder %s73, %s75
      %p79 = scmp.eq.s32.totalorder %s18, 0
      %p80 = por %p78, %p79
      %p81 = scmp.ne.s32.totalorder %s73, %s75
      %p82 = scmp.eq.s32.totalorder %s23, 1
      %p83 = por %p81, %p82
      %p84 = scmp.ne.s32.totalorder %s75, %s76
      %p85 = scmp.eq.s32.totalorder %s23, 0
      %p86 = por %p84, %p85
      %p87 = scmp.ne.s32.totalorder %s75, %s76
      %p88 = scmp.eq.s32.totalorder %s24, 1
      %p89 = por %p87, %p88
      %p91 = scmp.ne.s32.totalorder %s76, %s90
      %p92 = scmp.eq.s32.totalorder %s24, 0
      %p93 = por %p91, %p92
      %s95 = sadd.s32 %s94, 1
      %p98 = scmp.eq.s32.totalorder %s18, 1
      %p99 = scmp.ne.s32.totalorder %s94, %s96
      %p100 = scmp.eq.s32.totalorder %s18, 0
      %p101 = por %p99, %p100
      %p102 = scmp.ne.s32.totalorder %s94, %s96
      %p103 = scmp.eq.s32.totalorder %s23, 1
      %p104 = por %p102, %p103
      %p105 = scmp.ne.s32.totalorder %s96, %s97
      %p106 = scmp.eq.s32.totalorder %s23, 0
      %p107 = por %p105, %p106
      %p108 = scmp.ne.s32.totalorder %s96, %s97
      %p109 = scmp.eq.s32.totalorder %s24, 1
      %p110 = por %p108, %p109
      %p112 = scmp.ne.s32.totalorder %s97, %s111
      %p113 = scmp.eq.s32.totalorder %s24, 0
      %p114 = por %p112, %p113
      %s116 = sadd.s32 %s115, 1
      %p119 = scmp.eq.s32.totalorder %s18, 1
      %p120 = scmp.ne.s32.totalorder %s115, %s117
      %p121 = scmp.eq.s32.totalorder %s18, 0
      %p122 = por %p120, %p121
      %p123 = scmp.ne.s32.totalorder %s115, %s117
      %p124 = scmp.eq.s32.totalorder %s23, 1
      %p125 = por %p123, %p124
      %p126 = scmp.ne.s32.totalorder %s117, %s118
      %p127 = scmp.eq.s32.totalorder %s23, 0
      %p128 = por %p126, %p127
      %p129 = scmp.ne.s32.totalorder %s117, %s118
      %p130 = scmp.eq.s32.totalorder %s24, 1
      %p131 = por %p129, %p130
      %p133 = scmp.ne.s32.totalorder %s118, %s132
      %p134 = scmp.eq.s32.totalorder %s24, 0
      %p135 = por %p133, %p134
      %s137 = sadd.s32 %s136, 1
      %p140 = scmp.eq.s32.totalorder %s18, 1
      %p141 = scmp.ne.s32.totalorder %s136, %s138
      %p142 = scmp.eq.s32.totalorder %s18, 0
      %p143 = por %p141, %p142
      %p144 = scmp.ne.s32.totalorder %s136, %s138
      %p145 = scmp.eq.s32.totalorder %s23, 1
      %p146 = por %p144, %p145
      %p147 = scmp.ne.s32.totalorder %s138, %s139
      %p148 = scmp.eq.s32.totalorder %s23, 0
      %p149 = por %p147, %p148
      %p150 = scmp.ne.s32.totalorder %s138, %s139
      %p151 = scmp.eq.s32.totalorder %s24, 1
      %p152 = por %p150, %p151
      %p154 = scmp.ne.s32.totalorder %s139, %s153
      %p155 = scmp.eq.s32.totalorder %s24, 0
      %p156 = por %p154, %p155
      %s158 = sadd.s32 %s157, 1
      %p161 = scmp.eq.s32.totalorder %s18, 1
      %p162 = scmp.ne.s32.totalorder %s157, %s159
      %p163 = scmp.eq.s32.totalorder %s18, 0
      %p164 = por %p162, %p163
      %p165 = scmp.ne.s32.totalorder %s157, %s159
      %p166 = scmp.eq.s32.totalorder %s23, 1
      %p167 = por %p165, %p166
      %p168 = scmp.ne.s32.totalorder %s159, %s160
      %p169 = scmp.eq.s32.totalorder %s23, 0
      %p170 = por %p168, %p169
      %p171 = scmp.ne.s32.totalorder %s159, %s160
      %p172 = scmp.eq.s32.totalorder %s24, 1
      %p173 = por %p171, %p172
      %p175 = scmp.ne.s32.totalorder %s160, %s174
      %p176 = scmp.eq.s32.totalorder %s24, 0
      %p177 = por %p175, %p176
      %s179 = sadd.s32 %s178, 1
      %p182 = scmp.eq.s32.totalorder %s18, 1
      %p183 = scmp.ne.s32.totalorder %s178, %s180
      %p184 = scmp.eq.s32.totalorder %s18, 0
      %p185 = por %p183, %p184
      %p186 = scmp.ne.s32.totalorder %s178, %s180
      %p187 = scmp.eq.s32.totalorder %s23, 1
      %p188 = por %p186, %p187
      %p189 = scmp.ne.s32.totalorder %s180, %s181
      %p190 = scmp.eq.s32.totalorder %s23, 0
      %p191 = por %p189, %p190
      %p192 = scmp.ne.s32.totalorder %s180, %s181
      %p193 = scmp.eq.s32.totalorder %s24, 1
      %p194 = por %p192, %p193
      %p196 = scmp.ne.s32.totalorder %s181, %s195
      %p197 = scmp.eq.s32.totalorder %s24, 0
      %p198 = por %p196, %p197
      %s200 = sadd.s32 %s199, 1
      %p203 = scmp.eq.s32.totalorder %s18, 1
      %p204 = scmp.ne.s32.totalorder %s199, %s201
      %p205 = scmp.eq.s32.totalorder %s18, 0
      %p206 = por %p204, %p205
      %p207 = scmp.ne.s32.totalorder %s199, %s201
      %p208 = scmp.eq.s32.totalorder %s23, 1
      %p209 = por %p207, %p208
      %p210 = scmp.ne.s32.totalorder %s201, %s202
      %p211 = scmp.eq.s32.totalorder %s23, 0
      %p212 = por %p210, %p211
      %p213 = scmp.ne.s32.totalorder %s201, %s202
      %p214 = scmp.eq.s32.totalorder %s24, 1
      %p215 = por %p213, %p214
      %p217 = scmp.ne.s32.totalorder %s202, %s216
      %p218 = scmp.eq.s32.totalorder %s24, 0
      %p219 = por %p217, %p218
      %s220 = ssub.s32 %s18, %s25
      %p221 = scmp.eq.s32.totalorder %s220, 0
      %s223 = sadd.s32 %s222, 1
      %s224 = scalar_select %p221, %s222, %s223
      %p227 = pneg %p221
      %p228 = scmp.eq.s32.totalorder %s18, 1
      %p229 = por %p227, %p228
      %p230 = scmp.ne.s32.totalorder %s222, %s225
      %p231 = scmp.eq.s32.totalorder %s18, 0
      %p232 = por %p230, %p231
      %p233 = scmp.ne.s32.totalorder %s222, %s225
      %p234 = scmp.eq.s32.totalorder %s23, 1
      %p235 = por %p233, %p234
      %p236 = scmp.ne.s32.totalorder %s225, %s226
      %p237 = scmp.eq.s32.totalorder %s23, 0
      %p238 = por %p236, %p237
      %p239 = scmp.ne.s32.totalorder %s225, %s226
      %p240 = scmp.eq.s32.totalorder %s24, 1
      %p241 = por %p239, %p240
      %p243 = scmp.ne.s32.totalorder %s226, %s242
      %p244 = scmp.eq.s32.totalorder %s24, 0
      %p245 = por %p243, %p244
      %p246 = scmp.le.s32.totalorder 1, %s18
      %p247 = scmp.lt.s32.totalorder %s18, 3
      %p248 = pnand %p246, %p247
      %p249 = pneg %p248
      // Predicated region
      $region9: #{tpu_custom_call.1} parent=5 // pred_check
        _
      $region10: #{tpu_custom_call.1} parent=5 // pred_check_branch
        %251 = sbr.rel (%p248) target = $region12
      $region11: #{tpu_custom_call.1} parent=5 // pred_region
        %s252 = ssub.s32 %s18, 1
        // Predicated region
        $region13: #{tpu_custom_call.1} parent=11 // pred_check
          %p253 = pneg %p65
        $region14: #{tpu_custom_call.1} parent=11 // pred_check_branch
          %255 = sbr.rel (%p253) target = $region16
        $region15: #{tpu_custom_call.1} parent=11 // pred_region
          _
        $region16: #{tpu_custom_call.1} parent=11 // pred_fallthru
          _
        // Predicated region
        $region17: #{tpu_custom_call.1} parent=11 // pred_check
          %p256 = pneg %p86
        $region18: #{tpu_custom_call.1} parent=11 // pred_check_branch
          %258 = sbr.rel (%p256) target = $region20
        $region19: #{tpu_custom_call.1} parent=11 // pred_region
          _
        $region20: #{tpu_custom_call.1} parent=11 // pred_fallthru
          _
        // Predicated region
        $region21: #{tpu_custom_call.1} parent=11 // pred_check
          %p259 = pneg %p107
        $region22: #{tpu_custom_call.1} parent=11 // pred_check_branch
          %261 = sbr.rel (%p259) target = $region24
        $region23: #{tpu_custom_call.1} parent=11 // pred_region
          _
        $region24: #{tpu_custom_call.1} parent=11 // pred_fallthru
          _
        // Predicated region
        $region25: #{tpu_custom_call.1} parent=11 // pred_check
          %p262 = pneg %p128
        $region26: #{tpu_custom_call.1} parent=11 // pred_check_branch
          %264 = sbr.rel (%p262) target = $region28
        $region27: #{tpu_custom_call.1} parent=11 // pred_region
          _
        $region28: #{tpu_custom_call.1} parent=11 // pred_fallthru
          _
        // Predicated region
        $region29: #{tpu_custom_call.1} parent=11 // pred_check
          %p265 = pneg %p149
        $region30: #{tpu_custom_call.1} parent=11 // pred_check_branch
          %267 = sbr.rel (%p265) target = $region32
        $region31: #{tpu_custom_call.1} parent=11 // pred_region
          _
        $region32: #{tpu_custom_call.1} parent=11 // pred_fallthru
          _
        // Predicated region
        $region33: #{tpu_custom_call.1} parent=11 // pred_check
          %p268 = pneg %p170
        $region34: #{tpu_custom_call.1} parent=11 // pred_check_branch
          %270 = sbr.rel (%p268) target = $region36
        $region35: #{tpu_custom_call.1} parent=11 // pred_region
          _
        $region36: #{tpu_custom_call.1} parent=11 // pred_fallthru
          _
        // Predicated region
        $region37: #{tpu_custom_call.1} parent=11 // pred_check
          %p271 = pneg %p191
        $region38: #{tpu_custom_call.1} parent=11 // pred_check_branch
          %273 = sbr.rel (%p271) target = $region40
        $region39: #{tpu_custom_call.1} parent=11 // pred_region
          _
        $region40: #{tpu_custom_call.1} parent=11 // pred_fallthru
          _
        // Predicated region
        $region41: #{tpu_custom_call.1} parent=11 // pred_check
          %p274 = pneg %p212
        $region42: #{tpu_custom_call.1} parent=11 // pred_check_branch
          %276 = sbr.rel (%p274) target = $region44
        $region43: #{tpu_custom_call.1} parent=11 // pred_region
          _
        $region44: #{tpu_custom_call.1} parent=11 // pred_fallthru
          _
      $region12: #{tpu_custom_call.1} parent=5 // pred_fallthru
        _
      %p277 = scmp.lt.s32.totalorder %s18, 2
      // Predicated region
      $region45: #{tpu_custom_call.1} parent=5 // pred_check
        %p278 = pneg %p277
      $region46: #{tpu_custom_call.1} parent=5 // pred_check_branch
        %280 = sbr.rel (%p278) target = $region48
      $region47: #{tpu_custom_call.1} parent=5 // pred_region
        // Predicated region
        $region49: #{tpu_custom_call.1} parent=47 // pred_check
          %p281 = pneg %p38
        $region50: #{tpu_custom_call.1} parent=47 // pred_check_branch
          %283 = sbr.rel (%p281) target = $region52
        $region51: #{tpu_custom_call.1} parent=47 // pred_region
          %s284 = smul.u32 16, %s18
          %p285 = scmp.lt.s32.totalorder %s284, 31
          %s286 = scalar_select %p285, %s284, 31
          %s287 = smul.addr %s286, 4
          %s288 = scalar_lea.vmem %s0, %s287
          %s289 = smul.u32 16, %s18
        $region52: #{tpu_custom_call.1} parent=47 // pred_fallthru
          _
      $region48: #{tpu_custom_call.1} parent=5 // pred_fallthru
        _
      %p290 = scmp.le.s32.totalorder 1, %s18
      %p291 = scmp.lt.s32.totalorder %s18, 3
      %p292 = pnand %p290, %p291
      %p293 = pneg %p292
      // Predicated region
      $region53: #{tpu_custom_call.1} parent=5 // pred_check
        _
      $region54: #{tpu_custom_call.1} parent=5 // pred_check_branch
        %295 = sbr.rel (%p292) target = $region56
      $region55: #{tpu_custom_call.1} parent=5 // pred_region
        %s296 = ssub.s32 %s18, 1
        %s297 = smul.u32 16, %s23
        %p298 = scmp.lt.s32.totalorder %s297, 31
        %s299 = scalar_select %p298, %s297, 31
        %s300 = smul.addr %s299, 4
        %s301 = scalar_lea.vmem %s0, %s300
        %p302 = pneg %p44
        %p303 = pneg %p41
        %p304 = pneg %p65
        %p305 = pneg %p62
        %p306 = pneg %p86
        %p307 = pneg %p83
        %p308 = pneg %p107
        %p309 = pneg %p104
        %p310 = pneg %p128
        %p311 = pneg %p125
        %p312 = pneg %p149
        %p313 = pneg %p146
        %p314 = pneg %p170
        %p315 = pneg %p167
        %p316 = pneg %p191
        %p317 = pneg %p188
        %p318 = pneg %p212
        %p319 = pneg %p209
        %p320 = pneg %p238
        %p321 = pneg %p235
        %s322 = sand.u32 %s225, 1
        %s323 = scalar_lea.sflag [#allocation3], %s322
        %s324 = sand.u32 %s225, 1
        %s325 = smul.addr %s324, 128
        %s326 = scalar_lea.vmem [#allocation2], %s325
        %s327 = smul.u32 16, %s23
        %p328 = scmp.lt.s32.totalorder %s327, 31
        %s329 = scalar_select %p328, %s327, 31
        %s330 = smul.addr %s329, 4
        %s331 = scalar_lea.vmem %s0, %s330
        %s332 = smul.u32 16, %s23
        %s333 = smul.u32 16, %s23
        %v335 = vld [vmem:[%s331] sm:$0xf]
        %v336 = vld [vmem:[%s331 + $0x4] sm:$0xf]
        %v337 = vld [vmem:[%s331 + $0x8] sm:$0xf]
        %v338 = vld [vmem:[%s331 + $0xc] sm:$0xf]
        %v339 = vld [vmem:[%s331 + $0x10] sm:$0xf]
        %v340 = vld [vmem:[%s331 + $0x14] sm:$0xf]
        %v341 = vld [vmem:[%s331 + $0x18] sm:$0xf]
        %v342 = vld [vmem:[%s331 + $0x1c] sm:$0xf]
        %v343 = vld [vmem:[%s331 + $0x20] sm:$0xf]
        %v344 = vld [vmem:[%s331 + $0x24] sm:$0xf]
        %v345 = vld [vmem:[%s331 + $0x28] sm:$0xf]
        %v346 = vld [vmem:[%s331 + $0x2c] sm:$0xf]
        %v347 = vld [vmem:[%s331 + $0x30] sm:$0xf]
        %v348 = vld [vmem:[%s331 + $0x34] sm:$0xf]
        %v349 = vld [vmem:[%s331 + $0x38] sm:$0xf]
        %v350 = vld [vmem:[%s331 + $0x3c] sm:$0xf]
        %v351 = vld [vmem:[%s1] sm:$0xf]
        %v352 = vld [vmem:[%s1 + $0x4] sm:$0xf]
        %v353 = vld [vmem:[%s1 + $0x8] sm:$0xf]
        %v354 = vld [vmem:[%s1 + $0xc] sm:$0xf]
        %v355 = vld [vmem:[%s2] sm:$0x1]
        %v357 = vlaneseq
        %v358 = vshrl.u32 %v357, 7
        %v359 = vsub.s32 0, %v358
        %v360 = vrot.slane %v355, %v359
        %v378 = vunpack.c.l.b16 %v335
        %v379 = vunpack.c.l.b16 %v336
        %v380 = vunpack.c.l.b16 %v337
        %v381 = vunpack.c.l.b16 %v338
        %v382 = vunpack.c.l.b16 %v339
        %v383 = vunpack.c.l.b16 %v340
        %v384 = vunpack.c.l.b16 %v341
        %v385 = vunpack.c.l.b16 %v342
        %v386 = vunpack.c.l.b16 %v343
        %v387 = vunpack.c.l.b16 %v344
        %v388 = vunpack.c.l.b16 %v345
        %v389 = vunpack.c.l.b16 %v346
        %v390 = vunpack.c.l.b16 %v347
        %v391 = vunpack.c.l.b16 %v348
        %v392 = vunpack.c.l.b16 %v349
        %v393 = vunpack.c.l.b16 %v350
        %v394 = vpack.c.b16 %v379, %v378
        %v395 = vpack.c.b16 %v381, %v380
        %v396 = vpack.c.b16 %v383, %v382
        %v397 = vpack.c.b16 %v385, %v384
        %v398 = vpack.c.b16 %v387, %v386
        %v399 = vpack.c.b16 %v389, %v388
        %v400 = vpack.c.b16 %v391, %v390
        %v401 = vpack.c.b16 %v393, %v392
        %v406 = vunpack.c.l.b16 %v351
        %v407 = vunpack.c.l.b16 %v352
        %v408 = vunpack.c.l.b16 %v353
        %v409 = vunpack.c.l.b16 %v354
        %v410 = vpack.c.b16 %v407, %v406
        %v411 = vpack.c.b16 %v409, %v408
        %vm414 = vcmask 261120
        %v416 = vsel %vm414, %v394, 0
        %v419 = vsel %vm414, %v395, 0
        %v422 = vsel %vm414, %v396, 0
        %v425 = vsel %vm414, %v397, 0
        %v428 = vsel %vm414, %v398, 0
        %v431 = vsel %vm414, %v399, 0
        %v434 = vsel %vm414, %v400, 0
        %v437 = vsel %vm414, %v401, 0
        %439 = vmatprep.subr.bf16.mxu0 0
        %440 = vmatpush1.bf16.msra.mxu0 0
        %441 = vmatprep.subr.bf16.mxu0 0
        %442 = vmatpush1.bf16.msra.mxu0 0
        %443 = vmatprep.subr.bf16.mxu0 0
        %444 = vmatpush1.bf16.msra.mxu0 0
        %445 = vmatprep.subr.bf16.mxu0 0
        %446 = vmatpush1.bf16.msra.mxu0 0
        %447 = vmatprep.subr.bf16.mxu0 0
        %448 = vmatpush1.bf16.msra.mxu0 0
        %449 = vmatprep.subr.bf16.mxu0 0
        %450 = vmatpush1.bf16.msra.mxu0 0
        %451 = vmatprep.subr.bf16.mxu0 0
        %452 = vmatpush1.bf16.msra.mxu0 %v411
        %453 = vmatprep.subr.bf16.mxu0 0
        %454 = vmatpush1.bf16.msra.mxu0 %v410
        %455 = vmatprep.subr.bf16.mxu0 0
        %456 = vmatpush2.bf16.msra.mxu0 0
        %457 = vmatprep.subr.bf16.mxu0 0
        %458 = vmatpush2.bf16.msra.mxu0 0
        %459 = vmatprep.subr.bf16.mxu0 0
        %460 = vmatpush2.bf16.msra.mxu0 0
        %461 = vmatprep.subr.bf16.mxu0 0
        %462 = vmatpush2.bf16.msra.mxu0 0
        %463 = vmatprep.subr.bf16.mxu0 0
        %464 = vmatpush2.bf16.msra.mxu0 0
        %465 = vmatprep.subr.bf16.mxu0 0
        %466 = vmatpush2.bf16.msra.mxu0 0
        %467 = vmatprep.subr.bf16.mxu0 0
        %468 = vmatpush2.bf16.msra.mxu0 0
        %469 = vmatprep.subr.bf16.mxu0 0
        %470 = vmatpush2.bf16.msra.mxu0 0
        %471 = vmatprep.mubr.bf16.mxu0 0
        %472 = vmatmul.mubr.bf16.gmra.mxu0 %v416
        %v473 = vpop.f32.mrf.mxu0
        %v474 = vadd.f32 %v360, %v473
        %v475 = vpop.f32.mrf.mxu0
        %v476 = vpop.f32.mrf.mxu0
        %v477 = vadd.f32 %v360, %v476
        %v478 = vpop.f32.mrf.mxu0
        %479 = vmatprep.mubr.bf16.mxu0 0
        %480 = vmatmul.mubr.bf16.gmra.mxu0 %v419
        %v481 = vpop.f32.mrf.mxu0
        %v482 = vadd.f32 %v360, %v481
        %v483 = vpop.f32.mrf.mxu0
        %v484 = vpop.f32.mrf.mxu0
        %v485 = vadd.f32 %v360, %v484
        %v486 = vpop.f32.mrf.mxu0
        %487 = vmatprep.mubr.bf16.mxu0 0
        %488 = vmatmul.mubr.bf16.gmra.mxu0 %v422
        %v489 = vpop.f32.mrf.mxu0
        %v490 = vadd.f32 %v360, %v489
        %v491 = vpop.f32.mrf.mxu0
        %v492 = vpop.f32.mrf.mxu0
        %v493 = vadd.f32 %v360, %v492
        %v494 = vpop.f32.mrf.mxu0
        %495 = vmatprep.mubr.bf16.mxu0 0
        %496 = vmatmul.mubr.bf16.gmra.mxu0 %v425
        %v497 = vpop.f32.mrf.mxu0
        %v498 = vadd.f32 %v360, %v497
        %v499 = vpop.f32.mrf.mxu0
        %v500 = vpop.f32.mrf.mxu0
        %v501 = vadd.f32 %v360, %v500
        %v502 = vpop.f32.mrf.mxu0
        %503 = vmatprep.mubr.bf16.mxu0 0
        %504 = vmatmul.mubr.bf16.gmra.mxu0 %v428
        %v505 = vpop.f32.mrf.mxu0
        %v506 = vadd.f32 %v360, %v505
        %v507 = vpop.f32.mrf.mxu0
        %v508 = vpop.f32.mrf.mxu0
        %v509 = vadd.f32 %v360, %v508
        %v510 = vpop.f32.mrf.mxu0
        %511 = vmatprep.mubr.bf16.mxu0 0
        %512 = vmatmul.mubr.bf16.gmra.mxu0 %v431
        %v513 = vpop.f32.mrf.mxu0
        %v514 = vadd.f32 %v360, %v513
        %v515 = vpop.f32.mrf.mxu0
        %v516 = vpop.f32.mrf.mxu0
        %v517 = vadd.f32 %v360, %v516
        %v518 = vpop.f32.mrf.mxu0
        %519 = vmatprep.mubr.bf16.mxu0 0
        %520 = vmatmul.mubr.bf16.gmra.mxu0 %v434
        %v521 = vpop.f32.mrf.mxu0
        %v522 = vadd.f32 %v360, %v521
        %v523 = vpop.f32.mrf.mxu0
        %v524 = vpop.f32.mrf.mxu0
        %v525 = vadd.f32 %v360, %v524
        %v526 = vpop.f32.mrf.mxu0
        %527 = vmatprep.mubr.bf16.mxu0 0
        %528 = vmatmul.mubr.bf16.gmra.mxu0 %v437
        %v529 = vpop.f32.mrf.mxu0
        %v530 = vadd.f32 %v360, %v529
        %v531 = vpop.f32.mrf.mxu0
        %v532 = vpop.f32.mrf.mxu0
        %v533 = vadd.f32 %v360, %v532
        %v534 = vpop.f32.mrf.mxu0
        %535 = vdwg.mxu0
        %v536 = vmax.f32 %v474, 0.0
        %v537 = vmax.f32 %v477, 0.0
        %v538 = vmax.f32 %v482, 0.0
        %v539 = vmax.f32 %v485, 0.0
        %v540 = vmax.f32 %v490, 0.0
        %v541 = vmax.f32 %v493, 0.0
        %v542 = vmax.f32 %v498, 0.0
        %v543 = vmax.f32 %v501, 0.0
        %v544 = vmax.f32 %v506, 0.0
        %v545 = vmax.f32 %v509, 0.0
        %v546 = vmax.f32 %v514, 0.0
        %v547 = vmax.f32 %v517, 0.0
        %v548 = vmax.f32 %v522, 0.0
        %v549 = vmax.f32 %v525, 0.0
        %v550 = vmax.f32 %v530, 0.0
        %v551 = vmax.f32 %v533, 0.0
        %v552 = vpack.c.bf16 %v537, %v536
        %v553 = vpack.c.bf16 %v539, %v538
        %v554 = vpack.c.bf16 %v541, %v540
        %v555 = vpack.c.bf16 %v543, %v542
        %v556 = vpack.c.bf16 %v545, %v544
        %v557 = vpack.c.bf16 %v547, %v546
        %v558 = vpack.c.bf16 %v549, %v548
        %v559 = vpack.c.bf16 %v551, %v550
        %v560 = vld [vmem:[%s3] sm:$0xf]
        %v561 = vld [vmem:[%s3 + $0x4] sm:$0xf]
        %v562 = vld [vmem:[%s3 + $0x8] sm:$0xf]
        %v563 = vld [vmem:[%s3 + $0xc] sm:$0xf]
        %v564 = vld [vmem:[%s3 + $0x10] sm:$0xf]
        %v565 = vld [vmem:[%s3 + $0x14] sm:$0xf]
        %v566 = vld [vmem:[%s3 + $0x18] sm:$0xf]
        %v567 = vld [vmem:[%s3 + $0x1c] sm:$0xf]
        %v568 = vld [vmem:[%s4] sm:$0x1]
        %v570 = vlaneseq
        %v571 = vshrl.u32 %v570, 7
        %v572 = vsub.s32 0, %v571
        %v573 = vrot.slane %v568, %v572
        %v583 = vunpack.c.l.b16 %v560
        %v584 = vunpack.c.l.b16 %v561
        %v585 = vunpack.c.l.b16 %v562
        %v586 = vunpack.c.l.b16 %v563
        %v587 = vunpack.c.l.b16 %v564
        %v588 = vunpack.c.l.b16 %v565
        %v589 = vunpack.c.l.b16 %v566
        %v590 = vunpack.c.l.b16 %v567
        %v591 = vpack.c.b16 %v584, %v583
        %v592 = vpack.c.b16 %v586, %v585
        %v593 = vpack.c.b16 %v588, %v587
        %v594 = vpack.c.b16 %v590, %v589
        %vm599 = vcmask 523264
        %v601 = vsel %vm599, %v552, 0
        %v604 = vsel %vm599, %v553, 0
        %v607 = vsel %vm599, %v554, 0
        %v610 = vsel %vm599, %v555, 0
        %v613 = vsel %vm599, %v556, 0
        %v616 = vsel %vm599, %v557, 0
        %v619 = vsel %vm599, %v558, 0
        %v622 = vsel %vm599, %v559, 0
        %624 = vmatprep.subr.bf16.mxu0 0
        %625 = vmatpush1.bf16.msra.mxu0 0
        %626 = vmatprep.subr.bf16.mxu0 0
        %627 = vmatpush1.bf16.msra.mxu0 0
        %628 = vmatprep.subr.bf16.mxu0 0
        %629 = vmatpush1.bf16.msra.mxu0 0
        %630 = vmatprep.subr.bf16.mxu0 0
        %631 = vmatpush1.bf16.msra.mxu0 0
        %632 = vmatprep.subr.bf16.mxu0 0
        %633 = vmatpush1.bf16.msra.mxu0 %v594
        %634 = vmatprep.subr.bf16.mxu0 0
        %635 = vmatpush1.bf16.msra.mxu0 %v593
        %636 = vmatprep.subr.bf16.mxu0 0
        %637 = vmatpush1.bf16.msra.mxu0 %v592
        %638 = vmatprep.subr.bf16.mxu0 0
        %639 = vmatpush1.bf16.msra.mxu0 %v591
        %640 = vmatprep.subr.bf16.mxu0 0
        %641 = vmatpush2.bf16.msra.mxu0 0
        %642 = vmatprep.subr.bf16.mxu0 0
        %643 = vmatpush2.bf16.msra.mxu0 0
        %644 = vmatprep.subr.bf16.mxu0 0
        %645 = vmatpush2.bf16.msra.mxu0 0
        %646 = vmatprep.subr.bf16.mxu0 0
        %647 = vmatpush2.bf16.msra.mxu0 0
        %648 = vmatprep.subr.bf16.mxu0 0
        %649 = vmatpush2.bf16.msra.mxu0 0
        %650 = vmatprep.subr.bf16.mxu0 0
        %651 = vmatpush2.bf16.msra.mxu0 0
        %652 = vmatprep.subr.bf16.mxu0 0
        %653 = vmatpush2.bf16.msra.mxu0 0
        %654 = vmatprep.subr.bf16.mxu0 0
        %655 = vmatpush2.bf16.msra.mxu0 0
        %656 = vmatprep.mubr.bf16.mxu0 0
        %657 = vmatmul.mubr.bf16.gmra.mxu0 %v601
        %v658 = vpop.f32.mrf.mxu0
        %v659 = vadd.f32 %v573, %v658
        %v660 = vpop.f32.mrf.mxu0
        %v661 = vpop.f32.mrf.mxu0
        %v662 = vadd.f32 %v573, %v661
        %v663 = vpop.f32.mrf.mxu0
        %664 = vmatprep.mubr.bf16.mxu0 0
        %665 = vmatmul.mubr.bf16.gmra.mxu0 %v604
        %v666 = vpop.f32.mrf.mxu0
        %v667 = vadd.f32 %v573, %v666
        %v668 = vpop.f32.mrf.mxu0
        %v669 = vpop.f32.mrf.mxu0
        %v670 = vadd.f32 %v573, %v669
        %v671 = vpop.f32.mrf.mxu0
        %672 = vmatprep.mubr.bf16.mxu0 0
        %673 = vmatmul.mubr.bf16.gmra.mxu0 %v607
        %v674 = vpop.f32.mrf.mxu0
        %v675 = vadd.f32 %v573, %v674
        %v676 = vpop.f32.mrf.mxu0
        %v677 = vpop.f32.mrf.mxu0
        %v678 = vadd.f32 %v573, %v677
        %v679 = vpop.f32.mrf.mxu0
        %680 = vmatprep.mubr.bf16.mxu0 0
        %681 = vmatmul.mubr.bf16.gmra.mxu0 %v610
        %v682 = vpop.f32.mrf.mxu0
        %v683 = vadd.f32 %v573, %v682
        %v684 = vpop.f32.mrf.mxu0
        %v685 = vpop.f32.mrf.mxu0
        %v686 = vadd.f32 %v573, %v685
        %v687 = vpop.f32.mrf.mxu0
        %688 = vmatprep.mubr.bf16.mxu0 0
        %689 = vmatmul.mubr.bf16.gmra.mxu0 %v613
        %v690 = vpop.f32.mrf.mxu0
        %v691 = vadd.f32 %v573, %v690
        %v692 = vpop.f32.mrf.mxu0
        %v693 = vpop.f32.mrf.mxu0
        %v694 = vadd.f32 %v573, %v693
        %v695 = vpop.f32.mrf.mxu0
        %696 = vmatprep.mubr.bf16.mxu0 0
        %697 = vmatmul.mubr.bf16.gmra.mxu0 %v616
        %v698 = vpop.f32.mrf.mxu0
        %v699 = vadd.f32 %v573, %v698
        %v700 = vpop.f32.mrf.mxu0
        %v701 = vpop.f32.mrf.mxu0
        %v702 = vadd.f32 %v573, %v701
        %v703 = vpop.f32.mrf.mxu0
        %704 = vmatprep.mubr.bf16.mxu0 0
        %705 = vmatmul.mubr.bf16.gmra.mxu0 %v619
        %v706 = vpop.f32.mrf.mxu0
        %v707 = vadd.f32 %v573, %v706
        %v708 = vpop.f32.mrf.mxu0
        %v709 = vpop.f32.mrf.mxu0
        %v710 = vadd.f32 %v573, %v709
        %v711 = vpop.f32.mrf.mxu0
        %712 = vmatprep.mubr.bf16.mxu0 0
        %713 = vmatmul.mubr.bf16.gmra.mxu0 %v622
        %v714 = vpop.f32.mrf.mxu0
        %v715 = vadd.f32 %v573, %v714
        %v716 = vpop.f32.mrf.mxu0
        %v717 = vpop.f32.mrf.mxu0
        %v718 = vadd.f32 %v573, %v717
        %v719 = vpop.f32.mrf.mxu0
        %720 = vdwg.mxu0
        %v721 = vmax.f32 %v659, 0.0
        %v722 = vmax.f32 %v662, 0.0
        %v723 = vmax.f32 %v667, 0.0
        %v724 = vmax.f32 %v670, 0.0
        %v725 = vmax.f32 %v675, 0.0
        %v726 = vmax.f32 %v678, 0.0
        %v727 = vmax.f32 %v683, 0.0
        %v728 = vmax.f32 %v686, 0.0
        %v729 = vmax.f32 %v691, 0.0
        %v730 = vmax.f32 %v694, 0.0
        %v731 = vmax.f32 %v699, 0.0
        %v732 = vmax.f32 %v702, 0.0
        %v733 = vmax.f32 %v707, 0.0
        %v734 = vmax.f32 %v710, 0.0
        %v735 = vmax.f32 %v715, 0.0
        %v736 = vmax.f32 %v718, 0.0
        %v737 = vpack.c.bf16 %v722, %v721
        %v738 = vpack.c.bf16 %v724, %v723
        %v739 = vpack.c.bf16 %v726, %v725
        %v740 = vpack.c.bf16 %v728, %v727
        %v741 = vpack.c.bf16 %v730, %v729
        %v742 = vpack.c.bf16 %v732, %v731
        %v743 = vpack.c.bf16 %v734, %v733
        %v744 = vpack.c.bf16 %v736, %v735
        %v745 = vld [vmem:[%s5] sm:$0xf]
        %v746 = vld [vmem:[%s5 + $0x4] sm:$0xf]
        %v747 = vld [vmem:[%s5 + $0x8] sm:$0xf]
        %v748 = vld [vmem:[%s5 + $0xc] sm:$0xf]
        %v749 = vld [vmem:[%s5 + $0x10] sm:$0xf]
        %v750 = vld [vmem:[%s5 + $0x14] sm:$0xf]
        %v751 = vld [vmem:[%s5 + $0x18] sm:$0xf]
        %v752 = vld [vmem:[%s5 + $0x1c] sm:$0xf]
        %v753 = vld [vmem:[%s6] sm:$0x1]
        %v755 = vlaneseq
        %v756 = vshrl.u32 %v755, 7
        %v757 = vsub.s32 0, %v756
        %v758 = vrot.slane %v753, %v757
        %v768 = vunpack.c.l.b16 %v745
        %v769 = vunpack.c.l.b16 %v746
        %v770 = vunpack.c.l.b16 %v747
        %v771 = vunpack.c.l.b16 %v748
        %v772 = vunpack.c.l.b16 %v749
        %v773 = vunpack.c.l.b16 %v750
        %v774 = vunpack.c.l.b16 %v751
        %v775 = vunpack.c.l.b16 %v752
        %v776 = vpack.c.b16 %v769, %v768
        %v777 = vpack.c.b16 %v771, %v770
        %v778 = vpack.c.b16 %v773, %v772
        %v779 = vpack.c.b16 %v775, %v774
        %v785 = vsel %vm599, %v737, 0
        %v788 = vsel %vm599, %v738, 0
        %v791 = vsel %vm599, %v739, 0
        %v794 = vsel %vm599, %v740, 0
        %v797 = vsel %vm599, %v741, 0
        %v800 = vsel %vm599, %v742, 0
        %v803 = vsel %vm599, %v743, 0
        %v806 = vsel %vm599, %v744, 0
        %808 = vmatprep.subr.bf16.mxu0 0
        %809 = vmatpush1.bf16.msra.mxu0 0
        %810 = vmatprep.subr.bf16.mxu0 0
        %811 = vmatpush1.bf16.msra.mxu0 0
        %812 = vmatprep.subr.bf16.mxu0 0
        %813 = vmatpush1.bf16.msra.mxu0 0
        %814 = vmatprep.subr.bf16.mxu0 0
        %815 = vmatpush1.bf16.msra.mxu0 0
        %816 = vmatprep.subr.bf16.mxu0 0
        %817 = vmatpush1.bf16.msra.mxu0 %v779
        %818 = vmatprep.subr.bf16.mxu0 0
        %819 = vmatpush1.bf16.msra.mxu0 %v778
        %820 = vmatprep.subr.bf16.mxu0 0
        %821 = vmatpush1.bf16.msra.mxu0 %v777
        %822 = vmatprep.subr.bf16.mxu0 0
        %823 = vmatpush1.bf16.msra.mxu0 %v776
        %824 = vmatprep.subr.bf16.mxu0 0
        %825 = vmatpush2.bf16.msra.mxu0 0
        %826 = vmatprep.subr.bf16.mxu0 0
        %827 = vmatpush2.bf16.msra.mxu0 0
        %828 = vmatprep.subr.bf16.mxu0 0
        %829 = vmatpush2.bf16.msra.mxu0 0
        %830 = vmatprep.subr.bf16.mxu0 0
        %831 = vmatpush2.bf16.msra.mxu0 0
        %832 = vmatprep.subr.bf16.mxu0 0
        %833 = vmatpush2.bf16.msra.mxu0 0
        %834 = vmatprep.subr.bf16.mxu0 0
        %835 = vmatpush2.bf16.msra.mxu0 0
        %836 = vmatprep.subr.bf16.mxu0 0
        %837 = vmatpush2.bf16.msra.mxu0 0
        %838 = vmatprep.subr.bf16.mxu0 0
        %839 = vmatpush2.bf16.msra.mxu0 0
        %840 = vmatprep.mubr.bf16.mxu0 0
        %841 = vmatmul.mubr.bf16.gmra.mxu0 %v785
        %v842 = vpop.f32.mrf.mxu0
        %v843 = vadd.f32 %v758, %v842
        %v844 = vpop.f32.mrf.mxu0
        %v845 = vpop.f32.mrf.mxu0
        %v846 = vadd.f32 %v758, %v845
        %v847 = vpop.f32.mrf.mxu0
        %848 = vmatprep.mubr.bf16.mxu0 0
        %849 = vmatmul.mubr.bf16.gmra.mxu0 %v788
        %v850 = vpop.f32.mrf.mxu0
        %v851 = vadd.f32 %v758, %v850
        %v852 = vpop.f32.mrf.mxu0
        %v853 = vpop.f32.mrf.mxu0
        %v854 = vadd.f32 %v758, %v853
        %v855 = vpop.f32.mrf.mxu0
        %856 = vmatprep.mubr.bf16.mxu0 0
        %857 = vmatmul.mubr.bf16.gmra.mxu0 %v791
        %v858 = vpop.f32.mrf.mxu0
        %v859 = vadd.f32 %v758, %v858
        %v860 = vpop.f32.mrf.mxu0
        %v861 = vpop.f32.mrf.mxu0
        %v862 = vadd.f32 %v758, %v861
        %v863 = vpop.f32.mrf.mxu0
        %864 = vmatprep.mubr.bf16.mxu0 0
        %865 = vmatmul.mubr.bf16.gmra.mxu0 %v794
        %v866 = vpop.f32.mrf.mxu0
        %v867 = vadd.f32 %v758, %v866
        %v868 = vpop.f32.mrf.mxu0
        %v869 = vpop.f32.mrf.mxu0
        %v870 = vadd.f32 %v758, %v869
        %v871 = vpop.f32.mrf.mxu0
        %872 = vmatprep.mubr.bf16.mxu0 0
        %873 = vmatmul.mubr.bf16.gmra.mxu0 %v797
        %v874 = vpop.f32.mrf.mxu0
        %v875 = vadd.f32 %v758, %v874
        %v876 = vpop.f32.mrf.mxu0
        %v877 = vpop.f32.mrf.mxu0
        %v878 = vadd.f32 %v758, %v877
        %v879 = vpop.f32.mrf.mxu0
        %880 = vmatprep.mubr.bf16.mxu0 0
        %881 = vmatmul.mubr.bf16.gmra.mxu0 %v800
        %v882 = vpop.f32.mrf.mxu0
        %v883 = vadd.f32 %v758, %v882
        %v884 = vpop.f32.mrf.mxu0
        %v885 = vpop.f32.mrf.mxu0
        %v886 = vadd.f32 %v758, %v885
        %v887 = vpop.f32.mrf.mxu0
        %888 = vmatprep.mubr.bf16.mxu0 0
        %889 = vmatmul.mubr.bf16.gmra.mxu0 %v803
        %v890 = vpop.f32.mrf.mxu0
        %v891 = vadd.f32 %v758, %v890
        %v892 = vpop.f32.mrf.mxu0
        %v893 = vpop.f32.mrf.mxu0
        %v894 = vadd.f32 %v758, %v893
        %v895 = vpop.f32.mrf.mxu0
        %896 = vmatprep.mubr.bf16.mxu0 0
        %897 = vmatmul.mubr.bf16.gmra.mxu0 %v806
        %v898 = vpop.f32.mrf.mxu0
        %v899 = vadd.f32 %v758, %v898
        %v900 = vpop.f32.mrf.mxu0
        %v901 = vpop.f32.mrf.mxu0
        %v902 = vadd.f32 %v758, %v901
        %v903 = vpop.f32.mrf.mxu0
        %904 = vdwg.mxu0
        %v905 = vmax.f32 %v843, 0.0
        %v906 = vmax.f32 %v846, 0.0
        %v907 = vmax.f32 %v851, 0.0
        %v908 = vmax.f32 %v854, 0.0
        %v909 = vmax.f32 %v859, 0.0
        %v910 = vmax.f32 %v862, 0.0
        %v911 = vmax.f32 %v867, 0.0
        %v912 = vmax.f32 %v870, 0.0
        %v913 = vmax.f32 %v875, 0.0
        %v914 = vmax.f32 %v878, 0.0
        %v915 = vmax.f32 %v883, 0.0
        %v916 = vmax.f32 %v886, 0.0
        %v917 = vmax.f32 %v891, 0.0
        %v918 = vmax.f32 %v894, 0.0
        %v919 = vmax.f32 %v899, 0.0
        %v920 = vmax.f32 %v902, 0.0
        %v921 = vmax.f32 %v905, -1.0
        %v922 = vmax.f32 %v906, -1.0
        %v923 = vmax.f32 %v907, -1.0
        %v924 = vmax.f32 %v908, -1.0
        %v925 = vmax.f32 %v909, -1.0
        %v926 = vmax.f32 %v910, -1.0
        %v927 = vmax.f32 %v911, -1.0
        %v928 = vmax.f32 %v912, -1.0
        %v929 = vmax.f32 %v913, -1.0
        %v930 = vmax.f32 %v914, -1.0
        %v931 = vmax.f32 %v915, -1.0
        %v932 = vmax.f32 %v916, -1.0
        %v933 = vmax.f32 %v917, -1.0
        %v934 = vmax.f32 %v918, -1.0
        %v935 = vmax.f32 %v919, -1.0
        %v936 = vmax.f32 %v920, -1.0
        %v937 = vmin.f32 %v921, 1.0
        %v938 = vmin.f32 %v922, 1.0
        %v939 = vmin.f32 %v923, 1.0
        %v940 = vmin.f32 %v924, 1.0
        %v941 = vmin.f32 %v925, 1.0
        %v942 = vmin.f32 %v926, 1.0
        %v943 = vmin.f32 %v927, 1.0
        %v944 = vmin.f32 %v928, 1.0
        %v945 = vmin.f32 %v929, 1.0
        %v946 = vmin.f32 %v930, 1.0
        %v947 = vmin.f32 %v931, 1.0
        %v948 = vmin.f32 %v932, 1.0
        %v949 = vmin.f32 %v933, 1.0
        %v950 = vmin.f32 %v934, 1.0
        %v951 = vmin.f32 %v935, 1.0
        %v952 = vmin.f32 %v936, 1.0
        %v953 = vpack.c.bf16 %v938, %v937
        %v954 = vpack.c.bf16 %v940, %v939
        %v955 = vpack.c.bf16 %v942, %v941
        %v956 = vpack.c.bf16 %v944, %v943
        %v957 = vpack.c.bf16 %v946, %v945
        %v958 = vpack.c.bf16 %v948, %v947
        %v959 = vpack.c.bf16 %v950, %v949
        %v960 = vpack.c.bf16 %v952, %v951
        %v961 = vld [vmem:[%s7] sm:$0xf]
        %v962 = vld [vmem:[%s7 + $0x4] sm:$0xf]
        %v963 = vld [vmem:[%s8] sm:$0x1]
        %v965 = vlaneseq
        %v966 = vshrl.u32 %v965, 7
        %v967 = vsub.s32 0, %v966
        %v968 = vrot.slane %v963, %v967
        %v972 = vunpack.c.l.b16 %v961
        %v973 = vunpack.c.l.b16 %v962
        %v974 = vpack.c.b16 %v973, %v972
        %vm976 = vcmask 130048
        %v978 = vsel %vm976, %v953, 0
        %v981 = vsel %vm976, %v954, 0
        %v984 = vsel %vm976, %v955, 0
        %v987 = vsel %vm976, %v956, 0
        %v990 = vsel %vm976, %v957, 0
        %v993 = vsel %vm976, %v958, 0
        %v996 = vsel %vm976, %v959, 0
        %v999 = vsel %vm976, %v960, 0
        %1001 = vmatprep.subr.bf16.mxu0 0
        %1002 = vmatpush1.bf16.msra.mxu0 0
        %1003 = vmatprep.subr.bf16.mxu0 0
        %1004 = vmatpush1.bf16.msra.mxu0 0
        %1005 = vmatprep.subr.bf16.mxu0 0
        %1006 = vmatpush1.bf16.msra.mxu0 0
        %1007 = vmatprep.subr.bf16.mxu0 0
        %1008 = vmatpush1.bf16.msra.mxu0 0
        %1009 = vmatprep.subr.bf16.mxu0 0
        %1010 = vmatpush1.bf16.msra.mxu0 0
        %1011 = vmatprep.subr.bf16.mxu0 0
        %1012 = vmatpush1.bf16.msra.mxu0 0
        %1013 = vmatprep.subr.bf16.mxu0 0
        %1014 = vmatpush1.bf16.msra.mxu0 0
        %1015 = vmatprep.subr.bf16.mxu0 0
        %1016 = vmatpush1.bf16.msra.mxu0 %v974
        %1017 = vmatprep.subr.bf16.mxu0 0
        %1018 = vmatpush2.bf16.msra.mxu0 0
        %1019 = vmatprep.subr.bf16.mxu0 0
        %1020 = vmatpush2.bf16.msra.mxu0 0
        %1021 = vmatprep.subr.bf16.mxu0 0
        %1022 = vmatpush2.bf16.msra.mxu0 0
        %1023 = vmatprep.subr.bf16.mxu0 0
        %1024 = vmatpush2.bf16.msra.mxu0 0
        %1025 = vmatprep.subr.bf16.mxu0 0
        %1026 = vmatpush2.bf16.msra.mxu0 0
        %1027 = vmatprep.subr.bf16.mxu0 0
        %1028 = vmatpush2.bf16.msra.mxu0 0
        %1029 = vmatprep.subr.bf16.mxu0 0
        %1030 = vmatpush2.bf16.msra.mxu0 0
        %1031 = vmatprep.subr.bf16.mxu0 0
        %1032 = vmatpush2.bf16.msra.mxu0 0
        %1033 = vmatprep.mubr.bf16.mxu0 0
        %1034 = vmatmul.mubr.bf16.gmra.mxu0 %v978
        %v1035 = vpop.f32.mrf.mxu0
        %v1036 = vadd.f32 %v968, %v1035
        %v1037 = vpop.f32.mrf.mxu0
        %v1038 = vpop.f32.mrf.mxu0
        %v1039 = vadd.f32 %v968, %v1038
        %v1040 = vpop.f32.mrf.mxu0
        %1041 = vmatprep.mubr.bf16.mxu0 0
        %1042 = vmatmul.mubr.bf16.gmra.mxu0 %v981
        %v1043 = vpop.f32.mrf.mxu0
        %v1044 = vadd.f32 %v968, %v1043
        %v1045 = vpop.f32.mrf.mxu0
        %v1046 = vpop.f32.mrf.mxu0
        %v1047 = vadd.f32 %v968, %v1046
        %v1048 = vpop.f32.mrf.mxu0
        %1049 = vmatprep.mubr.bf16.mxu0 0
        %1050 = vmatmul.mubr.bf16.gmra.mxu0 %v984
        %v1051 = vpop.f32.mrf.mxu0
        %v1052 = vadd.f32 %v968, %v1051
        %v1053 = vpop.f32.mrf.mxu0
        %v1054 = vpop.f32.mrf.mxu0
        %v1055 = vadd.f32 %v968, %v1054
        %v1056 = vpop.f32.mrf.mxu0
        %1057 = vmatprep.mubr.bf16.mxu0 0
        %1058 = vmatmul.mubr.bf16.gmra.mxu0 %v987
        %v1059 = vpop.f32.mrf.mxu0
        %v1060 = vadd.f32 %v968, %v1059
        %v1061 = vpop.f32.mrf.mxu0
        %v1062 = vpop.f32.mrf.mxu0
        %v1063 = vadd.f32 %v968, %v1062
        %v1064 = vpop.f32.mrf.mxu0
        %1065 = vmatprep.mubr.bf16.mxu0 0
        %1066 = vmatmul.mubr.bf16.gmra.mxu0 %v990
        %v1067 = vpop.f32.mrf.mxu0
        %v1068 = vadd.f32 %v968, %v1067
        %v1069 = vpop.f32.mrf.mxu0
        %v1070 = vpop.f32.mrf.mxu0
        %v1071 = vadd.f32 %v968, %v1070
        %v1072 = vpop.f32.mrf.mxu0
        %1073 = vmatprep.mubr.bf16.mxu0 0
        %1074 = vmatmul.mubr.bf16.gmra.mxu0 %v993
        %v1075 = vpop.f32.mrf.mxu0
        %v1076 = vadd.f32 %v968, %v1075
        %v1077 = vpop.f32.mrf.mxu0
        %v1078 = vpop.f32.mrf.mxu0
        %v1079 = vadd.f32 %v968, %v1078
        %v1080 = vpop.f32.mrf.mxu0
        %1081 = vmatprep.mubr.bf16.mxu0 0
        %1082 = vmatmul.mubr.bf16.gmra.mxu0 %v996
        %v1083 = vpop.f32.mrf.mxu0
        %v1084 = vadd.f32 %v968, %v1083
        %v1085 = vpop.f32.mrf.mxu0
        %v1086 = vpop.f32.mrf.mxu0
        %v1087 = vadd.f32 %v968, %v1086
        %v1088 = vpop.f32.mrf.mxu0
        %1089 = vmatprep.mubr.bf16.mxu0 0
        %1090 = vmatmul.mubr.bf16.gmra.mxu0 %v999
        %v1091 = vpop.f32.mrf.mxu0
        %v1092 = vadd.f32 %v968, %v1091
        %v1093 = vpop.f32.mrf.mxu0
        %v1094 = vpop.f32.mrf.mxu0
        %v1095 = vadd.f32 %v968, %v1094
        %v1096 = vpop.f32.mrf.mxu0
        %1097 = vdwg.mxu0
        %1098 = vmax.xlane.f32.xlu0 %v1036
        %v1099 = vpop.xlane.xlu0 %1098
        %1100 = vmax.xlane.f32.xlu0 %v1039
        %v1101 = vpop.xlane.xlu0 %1100
        %1102 = vmax.xlane.f32.xlu0 %v1044
        %v1103 = vpop.xlane.xlu0 %1102
        %1104 = vmax.xlane.f32.xlu0 %v1047
        %v1105 = vpop.xlane.xlu0 %1104
        %1106 = vmax.xlane.f32.xlu0 %v1052
        %v1107 = vpop.xlane.xlu0 %1106
        %1108 = vmax.xlane.f32.xlu0 %v1055
        %v1109 = vpop.xlane.xlu0 %1108
        %1110 = vmax.xlane.f32.xlu0 %v1060
        %v1111 = vpop.xlane.xlu0 %1110
        %1112 = vmax.xlane.f32.xlu0 %v1063
        %v1113 = vpop.xlane.xlu0 %1112
        %1114 = vmax.xlane.f32.xlu0 %v1068
        %v1115 = vpop.xlane.xlu0 %1114
        %1116 = vmax.xlane.f32.xlu0 %v1071
        %v1117 = vpop.xlane.xlu0 %1116
        %1118 = vmax.xlane.f32.xlu0 %v1076
        %v1119 = vpop.xlane.xlu0 %1118
        %1120 = vmax.xlane.f32.xlu0 %v1079
        %v1121 = vpop.xlane.xlu0 %1120
        %1122 = vmax.xlane.f32.xlu0 %v1084
        %v1123 = vpop.xlane.xlu0 %1122
        %1124 = vmax.xlane.f32.xlu0 %v1087
        %v1125 = vpop.xlane.xlu0 %1124
        %1126 = vmax.xlane.f32.xlu0 %v1092
        %v1127 = vpop.xlane.xlu0 %1126
        %1128 = vmax.xlane.f32.xlu0 %v1095
        %v1129 = vpop.xlane.xlu0 %1128
        %v1130 = vsub.f32 %v1036, %v1099
        %v1131 = vsub.f32 %v1039, %v1101
        %v1132 = vsub.f32 %v1044, %v1103
        %v1133 = vsub.f32 %v1047, %v1105
        %v1134 = vsub.f32 %v1052, %v1107
        %v1135 = vsub.f32 %v1055, %v1109
        %v1136 = vsub.f32 %v1060, %v1111
        %v1137 = vsub.f32 %v1063, %v1113
        %v1138 = vsub.f32 %v1068, %v1115
        %v1139 = vsub.f32 %v1071, %v1117
        %v1140 = vsub.f32 %v1076, %v1119
        %v1141 = vsub.f32 %v1079, %v1121
        %v1142 = vsub.f32 %v1084, %v1123
        %v1143 = vsub.f32 %v1087, %v1125
        %v1144 = vsub.f32 %v1092, %v1127
        %v1145 = vsub.f32 %v1095, %v1129
        %v1146 = vmul.f32 %v1130, 1.442695
        %v1147 = vpow.pop %v1146
        %v1148 = vmul.f32 %v1131, 1.442695
        %v1149 = vpow.pop %v1148
        %v1150 = vmul.f32 %v1132, 1.442695
        %v1151 = vpow.pop %v1150
        %v1152 = vmul.f32 %v1133, 1.442695
        %v1153 = vpow.pop %v1152
        %v1154 = vmul.f32 %v1134, 1.442695
        %v1155 = vpow.pop %v1154
        %v1156 = vmul.f32 %v1135, 1.442695
        %v1157 = vpow.pop %v1156
        %v1158 = vmul.f32 %v1136, 1.442695
        %v1159 = vpow.pop %v1158
        %v1160 = vmul.f32 %v1137, 1.442695
        %v1161 = vpow.pop %v1160
        %v1162 = vmul.f32 %v1138, 1.442695
        %v1163 = vpow.pop %v1162
        %v1164 = vmul.f32 %v1139, 1.442695
        %v1165 = vpow.pop %v1164
        %v1166 = vmul.f32 %v1140, 1.442695
        %v1167 = vpow.pop %v1166
        %v1168 = vmul.f32 %v1141, 1.442695
        %v1169 = vpow.pop %v1168
        %v1170 = vmul.f32 %v1142, 1.442695
        %v1171 = vpow.pop %v1170
        %v1172 = vmul.f32 %v1143, 1.442695
        %v1173 = vpow.pop %v1172
        %v1174 = vmul.f32 %v1144, 1.442695
        %v1175 = vpow.pop %v1174
        %v1176 = vmul.f32 %v1145, 1.442695
        %v1177 = vpow.pop %v1176
        %1178 = vadd.xlane.f32.xlu0 %v1147
        %v1179 = vpop.xlane.xlu0 %1178
        %1180 = vadd.xlane.f32.xlu0 %v1149
        %v1181 = vpop.xlane.xlu0 %1180
        %1182 = vadd.xlane.f32.xlu0 %v1151
        %v1183 = vpop.xlane.xlu0 %1182
        %1184 = vadd.xlane.f32.xlu0 %v1153
        %v1185 = vpop.xlane.xlu0 %1184
        %1186 = vadd.xlane.f32.xlu0 %v1155
        %v1187 = vpop.xlane.xlu0 %1186
        %1188 = vadd.xlane.f32.xlu0 %v1157
        %v1189 = vpop.xlane.xlu0 %1188
        %1190 = vadd.xlane.f32.xlu0 %v1159
        %v1191 = vpop.xlane.xlu0 %1190
        %1192 = vadd.xlane.f32.xlu0 %v1161
        %v1193 = vpop.xlane.xlu0 %1192
        %1194 = vadd.xlane.f32.xlu0 %v1163
        %v1195 = vpop.xlane.xlu0 %1194
        %1196 = vadd.xlane.f32.xlu0 %v1165
        %v1197 = vpop.xlane.xlu0 %1196
        %1198 = vadd.xlane.f32.xlu0 %v1167
        %v1199 = vpop.xlane.xlu0 %1198
        %1200 = vadd.xlane.f32.xlu0 %v1169
        %v1201 = vpop.xlane.xlu0 %1200
        %1202 = vadd.xlane.f32.xlu0 %v1171
        %v1203 = vpop.xlane.xlu0 %1202
        %1204 = vadd.xlane.f32.xlu0 %v1173
        %v1205 = vpop.xlane.xlu0 %1204
        %1206 = vadd.xlane.f32.xlu0 %v1175
        %v1207 = vpop.xlane.xlu0 %1206
        %1208 = vadd.xlane.f32.xlu0 %v1177
        %v1209 = vpop.xlane.xlu0 %1208
        %v1210 = vrcp.pop %v1179
        %v1211 = vrcp.pop %v1181
        %v1212 = vrcp.pop %v1183
        %v1213 = vrcp.pop %v1185
        %v1214 = vrcp.pop %v1187
        %v1215 = vrcp.pop %v1189
        %v1216 = vrcp.pop %v1191
        %v1217 = vrcp.pop %v1193
        %v1218 = vrcp.pop %v1195
        %v1219 = vrcp.pop %v1197
        %v1220 = vrcp.pop %v1199
        %v1221 = vrcp.pop %v1201
        %v1222 = vrcp.pop %v1203
        %v1223 = vrcp.pop %v1205
        %v1224 = vrcp.pop %v1207
        %v1225 = vrcp.pop %v1209
        %v1226 = vmul.f32 %v1147, %v1210
        %v1227 = vmul.f32 %v1149, %v1211
        %v1228 = vmul.f32 %v1151, %v1212
        %v1229 = vmul.f32 %v1153, %v1213
        %v1230 = vmul.f32 %v1155, %v1214
        %v1231 = vmul.f32 %v1157, %v1215
        %v1232 = vmul.f32 %v1159, %v1216
        %v1233 = vmul.f32 %v1161, %v1217
        %v1234 = vmul.f32 %v1163, %v1218
        %v1235 = vmul.f32 %v1165, %v1219
        %v1236 = vmul.f32 %v1167, %v1220
        %v1237 = vmul.f32 %v1169, %v1221
        %v1238 = vmul.f32 %v1171, %v1222
        %v1239 = vmul.f32 %v1173, %v1223
        %v1240 = vmul.f32 %v1175, %v1224
        %v1241 = vmul.f32 %v1177, %v1225
        %1242 = vst [vmem:[%s326] sm:$0xff] %v1226
        %1243 = vst [vmem:[%s326 + $0x8] sm:$0xff] %v1227
        %1244 = vst [vmem:[%s326 + $0x10] sm:$0xff] %v1228
        %1245 = vst [vmem:[%s326 + $0x18] sm:$0xff] %v1229
        %1246 = vst [vmem:[%s326 + $0x20] sm:$0xff] %v1230
        %1247 = vst [vmem:[%s326 + $0x28] sm:$0xff] %v1231
        %1248 = vst [vmem:[%s326 + $0x30] sm:$0xff] %v1232
        %1249 = vst [vmem:[%s326 + $0x38] sm:$0xff] %v1233
        %1250 = vst [vmem:[%s326 + $0x40] sm:$0xff] %v1234
        %1251 = vst [vmem:[%s326 + $0x48] sm:$0xff] %v1235
        %1252 = vst [vmem:[%s326 + $0x50] sm:$0xff] %v1236
        %1253 = vst [vmem:[%s326 + $0x58] sm:$0xff] %v1237
        %1254 = vst [vmem:[%s326 + $0x60] sm:$0xff] %v1238
        %1255 = vst [vmem:[%s326 + $0x68] sm:$0xff] %v1239
        %1256 = vst [vmem:[%s326 + $0x70] sm:$0xff] %v1240
        %1257 = vst [vmem:[%s326 + $0x78] sm:$0xff] %v1241
        %s1258 = sand.u32 %s225, 1
        %s1259 = scalar_lea.sflag [#allocation3], %s1258
        %s1260 = sand.u32 %s225, 1
        %s1261 = smul.addr %s1260, 128
        %s1262 = scalar_lea.vmem [#allocation2], %s1261
        // Predicated region
        $region57: #{tpu_custom_call.1} parent=55 // pred_check
          %p1263 = pneg %p235
        $region58: #{tpu_custom_call.1} parent=55 // pred_check_branch
          %1265 = sbr.rel (%p1263) target = $region60
        $region59: #{tpu_custom_call.1} parent=55 // pred_region
          %s1266 = smul.u32 16, %s23
          %s1268 = ssub.s32 2048, 2048
          %1269 = vsyncadd %s1259, %s1268
          %s1270 = smul.addr %s1266, 128
          %s1271 = scalar_lea.hbm %s9, %s1270
          %s1272 = sshll.u32 %s1262, 4
          %s1273 = int_to_ptr.vmem [resolvable:$true] %s1272
          %1278 = dma.vmem_to_hbm [thread:$0]  %s1273, 2048, %s1271, %s1259, 128, 128, 8
        $region60: #{tpu_custom_call.1} parent=55 // pred_fallthru
          _
      $region56: #{tpu_custom_call.1} parent=5 // pred_fallthru
        _
      %p1279 = scmp.le.s32.totalorder 2, %s18
      // Predicated region
      $region61: #{tpu_custom_call.1} parent=5 // pred_check
        %p1280 = pneg %p1279
      $region62: #{tpu_custom_call.1} parent=5 // pred_check_branch
        %1282 = sbr.rel (%p1280) target = $region64
      $region63: #{tpu_custom_call.1} parent=5 // pred_region
        %s1283 = ssub.s32 %s18, 2
        // Predicated region
        $region65: #{tpu_custom_call.1} parent=63 // pred_check
          %p1284 = pneg %p241
        $region66: #{tpu_custom_call.1} parent=63 // pred_check_branch
          %1286 = sbr.rel (%p1284) target = $region68
        $region67: #{tpu_custom_call.1} parent=63 // pred_region
          %s1287 = sand.u32 %s226, 1
          %s1288 = scalar_lea.sflag [#allocation3], %s1287
          %s1289 = sand.u32 %s226, 1
          %s1290 = smul.addr %s1289, 128
          %s1291 = scalar_lea.vmem [#allocation2], %s1290
          %1292 = dma.done %s1288, 2048
        $region68: #{tpu_custom_call.1} parent=63 // pred_fallthru
          _
      $region64: #{tpu_custom_call.1} parent=5 // pred_fallthru
        _
    $region6: #{tpu_custom_call.1} parent=1 // loop_footer
      %s22 = sadd.s32 1, %s18
    $region7: #{tpu_custom_call.1} parent=1 // loop_footer_branch
      %17 = sbr.rel target = $region3
    $region8: #{tpu_custom_call.1} parent=1 // loop_exit
      _
    %1293 = vsyncpa [#allocation3], 1
    %s1294 = scalar_lea.sflag [#allocation3], 1
    %1295 = vsyncpa %s1294, 1

</llo_original>
